<compile_context>
chip_gen: v7x
topology: tpu7x:2x2x1
jax: 0.10.0
libtpu: 0.0.40
codegen_flags: <defaults>
</compile_context>

<pallas_src>
import functools

import numpy as np
import jax
import jax.numpy as jnp
from jax.experimental import pallas as pl
from jax.experimental.pallas import tpu as pltpu

LANE = 128
SUBLANE = 8


def _round_up(n, m):
    return (n + m - 1) // m * m


def _rbf_embed_kernel(x_ref, sel_ref, c_ref, w_ref, b_ref, o_ref, *, gamma: float):
    # x_ref  : (tn, P)    packed bond lengths (P bonds per row), f32
    # sel_ref: (P, Kp)    0/1 lane selector, sel[p, p*C + c] = 1, f32
    # c_ref  : (1, Kp)    centers tiled per lane group, f32
    # w_ref  : (Kp, Dout) block-diagonal weight (mxu dtype), zero in padded rows
    # b_ref  : (1, Dout)  bias tiled per lane group, f32
    # o_ref  : (tn, Dout) output tile, f32
    x = x_ref[...]                                   # (tn, P)
    sel = sel_ref[...]                               # (P, Kp)
    P = x.shape[1]

    # Exact lane expansion (pure VPU): x_exp[r, p*C + c] = x[r, p]; 0 on dead lanes.
    x_exp = x[:, 0:1] * sel[0:1, :]
    for p in range(1, P):
        x_exp = x_exp + x[:, p:p + 1] * sel[p:p + 1, :]

    diff = x_exp - c_ref[...]                        # (tn, Kp) VPU
    rbf = jnp.exp((-gamma) * diff * diff)            # EUP exp

    acc = jnp.dot(rbf.astype(w_ref.dtype), w_ref[...],      # MXU, f32 accumulate
                  preferred_element_type=jnp.float32)
    o_ref[...] = acc + b_ref[...]


def make_rbf_embedding(centers, gamma, weight, bias, *,
                       block_rows=1024, mxu_dtype=jnp.bfloat16):
    """Build a fused RBFEmbedding forward.  PyTorch parity:
        rbf = exp(-gamma * (bond_lengths.view(-1,1) - centers)**2)   # (N, C)
        out = rbf @ weight.T + bias                                  # (N, D)
    All parameter packing is done once here (hoisted out of the per-call path).
    """
    centers = np.asarray(centers, np.float32).reshape(-1)
    weight = np.asarray(weight, np.float32)           # (D, C) torch layout
    bias = np.asarray(bias, np.float32).reshape(-1)
    C = centers.shape[0]
    D = bias.shape[0]
    assert weight.shape == (D, C)
    gamma = float(gamma)

    # Pack P bond rows per 128-lane group when the output groups tile 128 exactly.
    if D <= LANE and LANE % D == 0 and LANE // D > 1:
        P = LANE // D
    else:
        P = 1
    Dout = _round_up(P * D, LANE) if P == 1 else P * D   # kernel output last dim
    Kp = _round_up(P * C, LANE)                          # contraction (lane) dim

    # Block-diagonal packed parameters (built once, on host).
    sel_np = np.zeros((P, Kp), np.float32)
    c_np = np.zeros((1, Kp), np.float32)
    w_np = np.zeros((Kp, Dout), np.float32)
    b_np = np.zeros((1, Dout), np.float32)
    for p in range(P):
        sel_np[p, p * C:(p + 1) * C] = 1.0
        c_np[0, p * C:(p + 1) * C] = centers
        w_np[p * C:(p + 1) * C, p * D:(p + 1) * D] = weight.T
        b_np[0, p * D:(p + 1) * D] = bias

    sel_j = jnp.asarray(sel_np)
    c_j = jnp.asarray(c_np)
    w_j = jnp.asarray(w_np, dtype=mxu_dtype)
    b_j = jnp.asarray(b_np)

    kernel = functools.partial(_rbf_embed_kernel, gamma=gamma)

    @jax.jit
    def forward(bond_lengths):
        x = jnp.asarray(bond_lengths, jnp.float32).reshape(-1)
        N = x.shape[0]
        nr = pl.cdiv(N, P)                         # packed rows
        if nr * P != N:                            # at most P-1 padded bonds
            x = jnp.pad(x, (0, nr * P - N))
        xp = x.reshape(nr, P)

        # Row tile: one big block if it fits; otherwise large tiles (amortize the
        # ~0.35us/step cost) but keep >= ~8 grid steps so v7x megacore can shard
        # the "parallel" axis across both TensorCores.
        if nr <= block_rows:
            tn = nr
        else:
            tn = min(block_rows, max(256, _round_up(pl.cdiv(nr, 8), SUBLANE)))
        grid = pl.cdiv(nr, tn)

        out = pl.pallas_call(
            kernel,
            out_shape=jax.ShapeDtypeStruct((nr, Dout), jnp.float32),
            grid=(grid,),
            in_specs=[
                pl.BlockSpec((tn, P), lambda i: (i, 0)),     # packed bonds: streamed
                pl.BlockSpec((P, Kp), lambda i: (0, 0)),     # selector: resident
                pl.BlockSpec((1, Kp), lambda i: (0, 0)),     # centers: resident
                pl.BlockSpec((Kp, Dout), lambda i: (0, 0)),  # weight: resident
                pl.BlockSpec((1, Dout), lambda i: (0, 0)),   # bias: resident
            ],
            out_specs=pl.BlockSpec((tn, Dout), lambda i: (i, 0)),
            compiler_params=pltpu.CompilerParams(
                dimension_semantics=("parallel",),
            ),
            # NOTE: if x/out DMAs ever show up exposed in a trace, bump the two
            # streamed specs to pipeline_mode=pl.Buffered(3); buffers are tiny.
        )(xp, sel_j, c_j, w_j, b_j)

        if P > 1:
            y = out.reshape(nr * P, D)             # contiguous, layout-preserving
        else:
            y = out if Dout == D else out[:, :D]
        if y.shape[0] != N:
            y = y[:N]
        return y

    return forward


if __name__ == "__main__":
    # Deterministic example consistent with the module:
    #   centers = arange(0, 2, 0.1) -> 20 RBF centers, gamma = 10.0, embed_dim = 32
    embed_dim = 32
    centers_np = np.arange(0.0, 2.0, 0.1, dtype=np.float32)          # (20,)
    gamma = 10.0
    n_centers = centers_np.shape[0]
    n_bonds = 16

    key = jax.random.PRNGKey(0)
    k_x, k_w, k_b = jax.random.split(key, 3)

    bond_lengths = jax.random.uniform(k_x, (n_bonds,), jnp.float32, 0.8, 1.8)
    # nn.Linear(n_centers, embed_dim): weight (embed_dim, n_centers), bias (embed_dim,)
    weight = jax.random.normal(k_w, (embed_dim, n_centers), jnp.float32) * 0.1
    bias = jax.random.normal(k_b, (embed_dim,), jnp.float32) * 0.1

    forward = make_rbf_embedding(centers_np, gamma, weight, bias)
    out = jax.block_until_ready(forward(bond_lengths))

    # Pure-JAX f32 reference (same forward math as the PyTorch module).
    rbf_ref = jnp.exp(-gamma * jnp.square(bond_lengths[:, None] - centers_np[None, :]))
    ref = rbf_ref @ weight.T + bias[None, :]

    assert out.shape == (n_bonds, embed_dim) and out.dtype == jnp.float32
    # bf16 MXU inputs with f32 accumulation -> ~1e-3-level deltas vs the f32 reference.
    assert jnp.allclose(out, ref, rtol=1e-2, atol=5e-3), "mismatch vs reference"
    print("KERNEL_OK")
</pallas_src>

<mosaic_0001>
module attributes {stable_mosaic.version = 11 : i64} {
  func.func @_rbf_embed_kernel(%arg0: i32, %arg1: memref<4x4xf32, #tpu.memory_space<vmem>>, %arg2: memref<4x128xf32, #tpu.memory_space<vmem>>, %arg3: memref<1x128xf32, #tpu.memory_space<vmem>>, %arg4: memref<128x128xbf16, #tpu.memory_space<vmem>>, %arg5: memref<1x128xf32, #tpu.memory_space<vmem>>, %arg6: memref<4x128xf32, #tpu.memory_space<vmem>>) attributes {dimension_semantics = [#tpu.dimension_semantics<parallel>], iteration_bounds = array<i64: 1>, scalar_prefetch = 0 : i64, scratch_operands = 0 : i64, tpu.core_type = #tpu.core_type<tc>, window_params = [{transform_indices = @transform_0, window_bounds = array<i64: 4, 4>}, {pipeline_mode = #tpu.pipeline_mode<synchronous>, transform_indices = @transform_1, window_bounds = array<i64: 4, 128>}, {pipeline_mode = #tpu.pipeline_mode<synchronous>, transform_indices = @transform_2, window_bounds = array<i64: 1, 128>}, {pipeline_mode = #tpu.pipeline_mode<synchronous>, transform_indices = @transform_3, window_bounds = array<i64: 128, 128>}, {pipeline_mode = #tpu.pipeline_mode<synchronous>, transform_indices = @transform_4, window_bounds = array<i64: 1, 128>}, {transform_indices = @transform_5, window_bounds = array<i64: 4, 128>}]} {
    %c0 = arith.constant 0 : index
    %c0_0 = arith.constant 0 : index
    %0 = vector.load %arg1[%c0, %c0_0] : memref<4x4xf32, #tpu.memory_space<vmem>>, vector<4x4xf32>
    %c0_1 = arith.constant 0 : index
    %c0_2 = arith.constant 0 : index
    %1 = vector.load %arg2[%c0_1, %c0_2] : memref<4x128xf32, #tpu.memory_space<vmem>>, vector<4x128xf32>
    %2 = vector.extract_strided_slice %0 {offsets = [0, 0], sizes = [4, 1], strides = [1, 1]} : vector<4x4xf32> to vector<4x1xf32>
    %3 = vector.extract_strided_slice %1 {offsets = [0, 0], sizes = [1, 128], strides = [1, 1]} : vector<4x128xf32> to vector<1x128xf32>
    %4 = vector.broadcast %2 : vector<4x1xf32> to vector<4x128xf32>
    %5 = vector.broadcast %3 : vector<1x128xf32> to vector<4x128xf32>
    %6 = arith.mulf %4, %5 : vector<4x128xf32>
    %7 = vector.extract_strided_slice %0 {offsets = [0, 1], sizes = [4, 1], strides = [1, 1]} : vector<4x4xf32> to vector<4x1xf32>
    %8 = vector.extract_strided_slice %1 {offsets = [1, 0], sizes = [1, 128], strides = [1, 1]} : vector<4x128xf32> to vector<1x128xf32>
    %9 = vector.broadcast %7 : vector<4x1xf32> to vector<4x128xf32>
    %10 = vector.broadcast %8 : vector<1x128xf32> to vector<4x128xf32>
    %11 = arith.mulf %9, %10 : vector<4x128xf32>
    %12 = arith.addf %6, %11 : vector<4x128xf32>
    %13 = vector.extract_strided_slice %0 {offsets = [0, 2], sizes = [4, 1], strides = [1, 1]} : vector<4x4xf32> to vector<4x1xf32>
    %14 = vector.extract_strided_slice %1 {offsets = [2, 0], sizes = [1, 128], strides = [1, 1]} : vector<4x128xf32> to vector<1x128xf32>
    %15 = vector.broadcast %13 : vector<4x1xf32> to vector<4x128xf32>
    %16 = vector.broadcast %14 : vector<1x128xf32> to vector<4x128xf32>
    %17 = arith.mulf %15, %16 : vector<4x128xf32>
    %18 = arith.addf %12, %17 : vector<4x128xf32>
    %19 = vector.extract_strided_slice %0 {offsets = [0, 3], sizes = [4, 1], strides = [1, 1]} : vector<4x4xf32> to vector<4x1xf32>
    %20 = vector.extract_strided_slice %1 {offsets = [3, 0], sizes = [1, 128], strides = [1, 1]} : vector<4x128xf32> to vector<1x128xf32>
    %21 = vector.broadcast %19 : vector<4x1xf32> to vector<4x128xf32>
    %22 = vector.broadcast %20 : vector<1x128xf32> to vector<4x128xf32>
    %23 = arith.mulf %21, %22 : vector<4x128xf32>
    %24 = arith.addf %18, %23 : vector<4x128xf32>
    %c0_3 = arith.constant 0 : index
    %c0_4 = arith.constant 0 : index
    %25 = vector.load %arg3[%c0_3, %c0_4] : memref<1x128xf32, #tpu.memory_space<vmem>>, vector<1x128xf32>
    %26 = vector.broadcast %25 : vector<1x128xf32> to vector<4x128xf32>
    %27 = arith.subf %24, %26 : vector<4x128xf32>
    %cst = arith.constant -1.000000e+01 : f32
    %28 = vector.broadcast %cst : f32 to vector<4x128xf32>
    %29 = arith.mulf %28, %27 : vector<4x128xf32>
    %30 = arith.mulf %29, %27 : vector<4x128xf32>
    %31 = math.exp %30 : vector<4x128xf32>
    %32 = arith.truncf %31 : vector<4x128xf32> to vector<4x128xbf16>
    %c0_5 = arith.constant 0 : index
    %c0_6 = arith.constant 0 : index
    %33 = vector.load %arg4[%c0_5, %c0_6] : memref<128x128xbf16, #tpu.memory_space<vmem>>, vector<128x128xbf16>
    %cst_7 = arith.constant dense<0.000000e+00> : vector<4x128xf32>
    %34 = tpu.matmul %32, %33, %cst_7 {dimension_numbers = #tpu.dot_dimension_numbers<[1], [0], [0], [1], [0, 0, 1, 1], [], []>} : vector<4x128xbf16>, vector<128x128xbf16>, vector<4x128xf32> -> vector<4x128xf32>
    %c0_8 = arith.constant 0 : index
    %c0_9 = arith.constant 0 : index
    %35 = vector.load %arg5[%c0_8, %c0_9] : memref<1x128xf32, #tpu.memory_space<vmem>>, vector<1x128xf32>
    %36 = vector.broadcast %35 : vector<1x128xf32> to vector<4x128xf32>
    %37 = arith.addf %34, %36 : vector<4x128xf32>
    %c0_10 = arith.constant 0 : index
    %c0_11 = arith.constant 0 : index
    %38 = vector.load %arg6[%c0_10, %c0_11] : memref<4x128xf32, #tpu.memory_space<vmem>>, vector<4x128xf32>
    tpu.vector_store %arg6[%c0_10, %c0_11], %37 {strides = array<i32>} : memref<4x128xf32, #tpu.memory_space<vmem>>, vector<4x128xf32>,
    return
  }
  func.func @transform_0(%arg0: i32) -> (i32, i32) {
    %c0_i32 = arith.constant 0 : i32
    %c0_i32_0 = arith.constant 0 : i32
    return %arg0, %c0_i32 : i32, i32
  }
  func.func @transform_1(%arg0: i32) -> (i32, i32) {
    %c0_i32 = arith.constant 0 : i32
    %c0_i32_0 = arith.constant 0 : i32
    %c0_i32_1 = arith.constant 0 : i32
    return %c0_i32, %c0_i32_0 : i32, i32
  }
  func.func @transform_2(%arg0: i32) -> (i32, i32) {
    %c0_i32 = arith.constant 0 : i32
    %c0_i32_0 = arith.constant 0 : i32
    %c0_i32_1 = arith.constant 0 : i32
    return %c0_i32, %c0_i32_0 : i32, i32
  }
  func.func @transform_3(%arg0: i32) -> (i32, i32) {
    %c0_i32 = arith.constant 0 : i32
    %c0_i32_0 = arith.constant 0 : i32
    %c0_i32_1 = arith.constant 0 : i32
    return %c0_i32, %c0_i32_0 : i32, i32
  }
  func.func @transform_4(%arg0: i32) -> (i32, i32) {
    %c0_i32 = arith.constant 0 : i32
    %c0_i32_0 = arith.constant 0 : i32
    %c0_i32_1 = arith.constant 0 : i32
    return %c0_i32, %c0_i32_0 : i32, i32
  }
  func.func @transform_5(%arg0: i32) -> (i32, i32) {
    %c0_i32 = arith.constant 0 : i32
    %c0_i32_0 = arith.constant 0 : i32
    return %arg0, %c0_i32 : i32, i32
  }
}

</mosaic_0001>

<llo_original>
// kernel: forward.1
$region0: #{forward.1}
  #allocation0 [shape = 'u32[]', space=smem, size = 0x4, offset = 0x4, fixed_abs, tag = 'smem constant byte address 0x4 - core index']
  #allocation1 [shape = 'u32[144,128]{1,0:T(1,128)}', space=vmem, size = 0x12000, scoped, tag = 'internal scratch']
  %s0 = inlined_call_operand.vmem [shape: f32[4,4], index: 0, kind: input, shape index: {}]
  %s1 = inlined_call_operand.vmem [shape: f32[4,128], index: 1, kind: input, shape index: {}]
  %s2 = inlined_call_operand.vmem [shape: f32[1,128], index: 2, kind: input, shape index: {}]
  %s3 = inlined_call_operand.hbm [shape: bf16[128,128], index: 3, kind: input, shape index: {}]
  %s4 = inlined_call_operand.vmem [shape: f32[1,128], index: 4, kind: input, shape index: {}]
  %s5 = inlined_call_operand.vmem [shape: f32[4,128], index: 5, kind: output, shape index: {}]
  %s6 = sld [smem:[#allocation0]]
  $region34: #{forward.1} parent=0
    _
  %s8 = ssub.s32 1, %s6
  %s9 = scalar_select 0, %s8, %s6
  $region1: #{forward.1} parent=0
    #allocation2 [shape = 'u8[32768]{0}', space=vmem, size = 0x8000, scoped, tag = 'input window, operand 3, single buffered']
    #allocation3 [shape = 's32[1]{0}', space=sflag, size = 0x4, scoped, tag = 'scoped memory for forward.1']
    %10 = vsyncpa [#allocation3], 0
    // Predicated region
    $region2: #{forward.1} parent=1 // pred_check
      _
    $region3: #{forward.1} parent=1 // pred_check_branch
      %12 = sbr.rel (0) target = $region5
    $region4: #{forward.1} parent=1 // pred_region
      _
    $region5: #{forward.1} parent=1 // pred_fallthru
      _
    // Predicated region
    $region6: #{forward.1} parent=1 // pred_check
      _
    $region7: #{forward.1} parent=1 // pred_check_branch
      %14 = sbr.rel (0) target = $region9
    $region8: #{forward.1} parent=1 // pred_region
      _
    $region9: #{forward.1} parent=1 // pred_fallthru
      _
    // Predicated region
    $region10: #{forward.1} parent=1 // pred_check
      _
    $region11: #{forward.1} parent=1 // pred_check_branch
      %16 = sbr.rel (0) target = $region13
    $region12: #{forward.1} parent=1 // pred_region
      _
    $region13: #{forward.1} parent=1 // pred_fallthru
      _
    // Predicated region
    $region14: #{forward.1} parent=1 // pred_check
      _
    $region15: #{forward.1} parent=1 // pred_check_branch
      %18 = sbr.rel (0) target = $region17
    $region16: #{forward.1} parent=1 // pred_region
      %s20 = ssub.s32 1024, 1024
      %21 = vsyncadd [#allocation3], %s20
      %s22 = sshll.u32 [#allocation2], 4
      %s23 = int_to_ptr.vmem [resolvable:$true] %s22
      %28 = dma.hbm_to_vmem [thread:$0]  %s3, 1024, %s23, [#allocation3], 64, 64, 4
    $region17: #{forward.1} parent=1 // pred_fallthru
      _
    // Predicated region
    $region18: #{forward.1} parent=1 // pred_check
      _
    $region19: #{forward.1} parent=1 // pred_check_branch
      %30 = sbr.rel (0) target = $region21
    $region20: #{forward.1} parent=1 // pred_region
      _
    $region21: #{forward.1} parent=1 // pred_fallthru
      _
    // Predicated region
    $region22: #{forward.1} parent=1 // pred_check
      _
    $region23: #{forward.1} parent=1 // pred_check_branch
      %32 = sbr.rel (0) target = $region25
    $region24: #{forward.1} parent=1 // pred_region
      %33 = dma.done [#allocation3], 1024
    $region25: #{forward.1} parent=1 // pred_fallthru
      _
    %v35 = vld [vmem:[%s0] sm:$0xf]
    %v36 = vld [vmem:[%s1] sm:$0xf]
    %38 = vset.pattern.permute.xlu0 0
    %39 = vperm.xlu0 %38, %v35
    %v40 = vpop.permute.xlu0 %39
    %v42 = vlaneseq
    %v43 = vshrl.u32 %v42, 7
    %v44 = vsub.s32 0, %v43
    %v45 = vrot.slane %v36, %v44
    %v46 = vmul.f32 %v40, %v45
    %47 = vset.pattern.permute.xlu0 1
    %48 = vperm.xlu0 %47, %v35
    %v49 = vpop.permute.xlu0 %48
    %v51 = vlaneseq
    %v52 = vshrl.u32 %v51, 7
    %v53 = vsub.s32 1, %v52
    %v54 = vrot.slane %v36, %v53
    %v55 = vmul.f32 %v49, %v54
    %v56 = vadd.f32 %v46, %v55
    %57 = vset.pattern.permute.xlu0 2
    %58 = vperm.xlu0 %57, %v35
    %v59 = vpop.permute.xlu0 %58
    %v61 = vlaneseq
    %v62 = vshrl.u32 %v61, 7
    %v63 = vsub.s32 2, %v62
    %v64 = vrot.slane %v36, %v63
    %v65 = vmul.f32 %v59, %v64
    %v66 = vadd.f32 %v56, %v65
    %67 = vset.pattern.permute.xlu0 3
    %68 = vperm.xlu0 %67, %v35
    %v69 = vpop.permute.xlu0 %68
    %v71 = vlaneseq
    %v72 = vshrl.u32 %v71, 7
    %v73 = vsub.s32 3, %v72
    %v74 = vrot.slane %v36, %v73
    %v75 = vmul.f32 %v69, %v74
    %v76 = vadd.f32 %v66, %v75
    %v77 = vld [vmem:[%s2] sm:$0x1]
    %v79 = vlaneseq
    %v80 = vshrl.u32 %v79, 7
    %v81 = vsub.s32 0, %v80
    %v82 = vrot.slane %v77, %v81
    %v84 = vsub.f32 %v76, %v82
    %v85 = vmul.f32 %v84, -10.0
    %v86 = vmul.f32 %v85, %v84
    %v87 = vmul.f32 %v86, 1.442695
    %v88 = vpow.pop %v87
    %v89 = vpack.c.bf16 %v88, %v88
    %v90 = vld [vmem:[#allocation2] sm:$0xf]
    %v91 = vld [vmem:[#allocation2 + $0x4] sm:$0xf]
    %v92 = vld [vmem:[#allocation2 + $0x8] sm:$0xf]
    %v93 = vld [vmem:[#allocation2 + $0xc] sm:$0xf]
    %v94 = vld [vmem:[#allocation2 + $0x10] sm:$0xf]
    %v95 = vld [vmem:[#allocation2 + $0x14] sm:$0xf]
    %v96 = vld [vmem:[#allocation2 + $0x18] sm:$0xf]
    %v97 = vld [vmem:[#allocation2 + $0x1c] sm:$0xf]
    %v98 = vld [vmem:[#allocation2 + $0x20] sm:$0xf]
    %v99 = vld [vmem:[#allocation2 + $0x24] sm:$0xf]
    %v100 = vld [vmem:[#allocation2 + $0x28] sm:$0xf]
    %v101 = vld [vmem:[#allocation2 + $0x2c] sm:$0xf]
    %v102 = vld [vmem:[#allocation2 + $0x30] sm:$0xf]
    %v103 = vld [vmem:[#allocation2 + $0x34] sm:$0xf]
    %v104 = vld [vmem:[#allocation2 + $0x38] sm:$0xf]
    %v105 = vld [vmem:[#allocation2 + $0x3c] sm:$0xf]
    %v106 = vld [vmem:[%s4] sm:$0x1]
    %v108 = vlaneseq
    %v109 = vshrl.u32 %v108, 7
    %v110 = vsub.s32 0, %v109
    %v111 = vrot.slane %v106, %v110
    %v129 = vunpack.c.l.b16 %v90
    %v130 = vunpack.c.l.b16 %v91
    %v131 = vunpack.c.l.b16 %v92
    %v132 = vunpack.c.l.b16 %v93
    %v133 = vunpack.c.l.b16 %v94
    %v134 = vunpack.c.l.b16 %v95
    %v135 = vunpack.c.l.b16 %v96
    %v136 = vunpack.c.l.b16 %v97
    %v137 = vunpack.c.l.b16 %v98
    %v138 = vunpack.c.l.b16 %v99
    %v139 = vunpack.c.l.b16 %v100
    %v140 = vunpack.c.l.b16 %v101
    %v141 = vunpack.c.l.b16 %v102
    %v142 = vunpack.c.l.b16 %v103
    %v143 = vunpack.c.l.b16 %v104
    %v144 = vunpack.c.l.b16 %v105
    %v145 = vpack.c.b16 %v130, %v129
    %v146 = vpack.c.b16 %v132, %v131
    %v147 = vpack.c.b16 %v134, %v133
    %v148 = vpack.c.b16 %v136, %v135
    %v149 = vpack.c.b16 %v138, %v137
    %v150 = vpack.c.b16 %v140, %v139
    %v151 = vpack.c.b16 %v142, %v141
    %v152 = vpack.c.b16 %v144, %v143
    %161 = vmatprep.subr.bf16.mxu0 0
    %162 = vmatpush1.bf16.msra.mxu0 %v145
    %163 = vmatprep.subr.bf16.mxu0 0
    %164 = vmatpush1.bf16.msra.mxu0 %v146
    %165 = vmatprep.subr.bf16.mxu0 0
    %166 = vmatpush1.bf16.msra.mxu0 %v147
    %167 = vmatprep.subr.bf16.mxu0 0
    %168 = vmatpush1.bf16.msra.mxu0 %v148
    %169 = vmatprep.subr.bf16.mxu0 0
    %170 = vmatpush1.bf16.msra.mxu0 %v149
    %171 = vmatprep.subr.bf16.mxu0 0
    %172 = vmatpush1.bf16.msra.mxu0 %v150
    %173 = vmatprep.subr.bf16.mxu0 0
    %174 = vmatpush1.bf16.msra.mxu0 %v151
    %175 = vmatprep.subr.bf16.mxu0 0
    %176 = vmatpush1.bf16.msra.mxu0 %v152
    %177 = vmatprep.subr.bf16.mxu0 0
    %178 = vmatpush1.bf16.msra.mxu0 0
    %179 = vmatprep.subr.bf16.mxu0 0
    %180 = vmatpush1.bf16.msra.mxu0 0
    %181 = vmatprep.subr.bf16.mxu0 0
    %182 = vmatpush1.bf16.msra.mxu0 0
    %183 = vmatprep.subr.bf16.mxu0 0
    %184 = vmatpush1.bf16.msra.mxu0 0
    %185 = vmatprep.subr.bf16.mxu0 0
    %186 = vmatpush1.bf16.msra.mxu0 0
    %187 = vmatprep.subr.bf16.mxu0 0
    %188 = vmatpush1.bf16.msra.mxu0 0
    %189 = vmatprep.subr.bf16.mxu0 0
    %190 = vmatpush1.bf16.msra.mxu0 0
    %191 = vmatprep.subr.bf16.mxu0 0
    %192 = vmatpush1.bf16.msra.mxu0 0
    %193 = vmatprep.mubr.bf16.mxu0 0
    %194 = vmatmul.mubr.bf16.gmra.mrb[0].mxu0 %v89
    %v195 = vpop.f32.mrb[0].mxu0
    %v196 = vadd.f32 %v111, %v195
    %v197 = vpop.f32.mrb[0].mxu0
    %v198 = vpop.f32.mrb[0].mxu0
    %v199 = vpop.f32.mrb[0].mxu0
    %200 = vdwg.mxu0
    %201 = vst [vmem:[%s5] sm:$0xf] %v196
    // Predicated region
    $region26: #{forward.1} parent=1 // pred_check
      _
    $region27: #{forward.1} parent=1 // pred_check_branch
      %203 = sbr.rel (0) target = $region29
    $region28: #{forward.1} parent=1 // pred_region
      _
    $region29: #{forward.1} parent=1 // pred_fallthru
      _
    // Predicated region
    $region30: #{forward.1} parent=1 // pred_check
      _
    $region31: #{forward.1} parent=1 // pred_check_branch
      %205 = sbr.rel (0) target = $region33
    $region32: #{forward.1} parent=1 // pred_region
      _
    $region33: #{forward.1} parent=1 // pred_fallthru
      _
    %206 = vsyncpa [#allocation3], 1

</llo_original>
